<compile_context>
chip_gen: v7x
topology: tpu7x:2x2x1
jax: 0.10.0
libtpu: 0.0.40
codegen_flags: <defaults>
</compile_context>

<pallas_src>
import numpy as np
import jax
import jax.numpy as jnp
from jax.experimental import pallas as pl
from jax.experimental.pallas import tpu as pltpu


# Output-block byte budget per grid step.  Inputs sum to the output block and
# Pallas double-buffers both, so the worst-case VMEM footprint is ~4x this
# (~32 MiB), under the explicit limit below on every generation.
_OUT_BLOCK_BUDGET_BYTES = 8 * 1024 * 1024
_VMEM_LIMIT_BYTES = 40 * 1024 * 1024
_MAX_LANE_BLOCK = 2048          # lanes per block in the (outer, c, inner) path
_DMA_ALIGN_BYTES = 512          # alignment gate for the HBM->HBM DMA path


def _round_up(x, m):
    return ((x + m - 1) // m) * m


def _sublane_pack(dtype):
    # Sub-32-bit dtypes pack along sublanes: 8 rows (f32), 16 (bf16), 32 (int8).
    return max(8, 32 // max(1, int(jnp.dtype(dtype).itemsize)))


def _compiler_params(dims):
    return pltpu.CompilerParams(dimension_semantics=dims,
                                vmem_limit_bytes=_VMEM_LIMIT_BYTES)


# ---------------------------------------------------------------------------
# Kernels
# ---------------------------------------------------------------------------

def _concat_kernel_lanes(num_inputs):
    """Blocks are (rows, width_i); concat happens along the lane axis."""
    def kernel(*refs):
        in_refs = refs[:num_inputs]
        out_ref = refs[num_inputs]
        off = 0
        for r in in_refs:
            w = r.shape[1]                      # static per-input lane width
            out_ref[:, off:off + w] = r[...].astype(out_ref.dtype)
            off += w
    return kernel


def _concat_kernel_3d(num_inputs):
    """Blocks are (rows, c_i, lanes); concat happens along the middle axis."""
    def kernel(*refs):
        in_refs = refs[:num_inputs]
        out_ref = refs[num_inputs]
        off = 0
        for r in in_refs:
            c = r.shape[1]                      # static per-input concat extent
            out_ref[:, off:off + c, :] = r[...].astype(out_ref.dtype)
            off += c
    return kernel


def _concat_dma_kernel(num_inputs, row_counts):
    """All refs live in HBM; each input is one contiguous slab of the output."""
    def kernel(*refs):
        in_refs = refs[:num_inputs]
        out_ref = refs[num_inputs]
        sem = refs[num_inputs + 1]
        copies = []
        off = 0
        for i, (r, rows) in enumerate(zip(in_refs, row_counts)):
            cp = pltpu.make_async_copy(r, out_ref.at[pl.ds(off, rows)], sem.at[i])
            cp.start()
            copies.append(cp)
            off += rows
        for cp in copies:
            cp.wait()
    return kernel


# ---------------------------------------------------------------------------
# Path builders
# ---------------------------------------------------------------------------

def _concat_lanes(flat_inputs, widths, out_dtype, cost):
    """Concat 2-D (outer, width_i) views along the lane axis. None if infeasible."""
    outer = int(flat_inputs[0].shape[0])
    total_w = int(sum(widths))
    itemsize = int(jnp.dtype(out_dtype).itemsize)
    sub = _sublane_pack(out_dtype)

    row_bytes = total_w * itemsize
    min_rows = outer if outer < sub else sub
    if min_rows * row_bytes > _OUT_BLOCK_BUDGET_BYTES:
        return None     # even the smallest aligned block exceeds the budget

    if outer <= sub:
        bo = outer      # full extent (allowed even if not a multiple of sub)
    else:
        bo = min(outer, (_OUT_BLOCK_BUDGET_BYTES // row_bytes) // sub * sub)
        if bo >= outer:
            # Guarantee >=2 grid steps so both v7x TensorCores get work.
            half = _round_up(pl.cdiv(outer, 2), sub)
            if half < outer:
                bo = half
            else:
                bo = outer
    grid = (pl.cdiv(outer, bo),)

    in_specs = [pl.BlockSpec((bo, w), lambda o: (o, 0)) for w in widths]
    out_specs = pl.BlockSpec((bo, total_w), lambda o: (o, 0))
    return pl.pallas_call(
        _concat_kernel_lanes(len(flat_inputs)),
        out_shape=jax.ShapeDtypeStruct((outer, total_w), out_dtype),
        grid=grid,
        in_specs=in_specs,
        out_specs=out_specs,
        compiler_params=_compiler_params(("parallel",)),
        cost_estimate=cost,
    )(*flat_inputs)


def _concat_3d(tensors, c_sizes, outer, inner, out_dtype, cost):
    """Concat (outer, c_i, inner) views along the middle axis. None if infeasible."""
    c_total = int(sum(c_sizes))
    itemsize = int(jnp.dtype(out_dtype).itemsize)

    bi = min(inner, _MAX_LANE_BLOCK)
    if bi < inner:
        bi = max(128, (bi // 128) * 128)
    while bi > 128 and c_total * bi * itemsize > _OUT_BLOCK_BUDGET_BYTES:
        bi = max(128, ((bi // 2) // 128) * 128)
    if c_total * bi * itemsize > _OUT_BLOCK_BUDGET_BYTES:
        return None     # concat extent alone exceeds the block budget

    row_bytes = c_total * bi * itemsize
    bo = max(1, min(outer, _OUT_BLOCK_BUDGET_BYTES // row_bytes))

    # Guarantee >=2 grid steps (v7x megacore) when there is room to split.
    if pl.cdiv(outer, bo) * pl.cdiv(inner, bi) == 1:
        if outer >= 2:
            bo = pl.cdiv(outer, 2)
        elif inner >= 256:
            half_bi = _round_up(pl.cdiv(inner, 2), 128)
            if half_bi < inner:
                bi = half_bi

    grid = (pl.cdiv(outer, bo), pl.cdiv(inner, bi))
    call_inputs = [t.reshape(outer, c, inner) for t, c in zip(tensors, c_sizes)]
    in_specs = [pl.BlockSpec((bo, c, bi), lambda o, j: (o, 0, j))
                for c in c_sizes]
    out_specs = pl.BlockSpec((bo, c_total, bi), lambda o, j: (o, 0, j))
    return pl.pallas_call(
        _concat_kernel_3d(len(call_inputs)),
        out_shape=jax.ShapeDtypeStruct((outer, c_total, inner), out_dtype),
        grid=grid,
        in_specs=in_specs,
        out_specs=out_specs,
        compiler_params=_compiler_params(("parallel", "parallel")),
        cost_estimate=cost,
    )(*call_inputs)


def _concat_dma(tensors, c_sizes, inner, out_dtype, out_shape, cost):
    """outer == 1: each input is one contiguous slab of the output, so copy
    HBM->HBM directly (no VMEM staging, no grid-step overhead)."""
    c_total = int(sum(c_sizes))
    flat = [t.reshape(c, inner) for t, c in zip(tensors, c_sizes)]
    out = pl.pallas_call(
        _concat_dma_kernel(len(flat), c_sizes),
        out_shape=jax.ShapeDtypeStruct((c_total, inner), out_dtype),
        in_specs=[pl.BlockSpec(memory_space=pl.ANY)] * len(flat),
        out_specs=pl.BlockSpec(memory_space=pl.ANY),
        scratch_shapes=[pltpu.SemaphoreType.DMA((len(flat),))],
        cost_estimate=cost,
    )(*flat)
    return out.reshape(out_shape)


# ---------------------------------------------------------------------------
# Public wrapper
# ---------------------------------------------------------------------------

def concat_pallas(tensor_list, axis, *, xla_fallback_bytes=0):
    """Pallas equivalent of torch.cat(tensor_list, dim=axis)."""
    if len(tensor_list) == 0:
        raise ValueError("need at least one tensor")
    ndim = tensor_list[0].ndim
    if axis < 0:
        axis += ndim
    if not 0 <= axis < ndim:
        raise ValueError(f"axis {axis} out of range for ndim {ndim}")

    in_shapes = [tuple(t.shape) for t in tensor_list]
    out_dtype = jnp.result_type(*[t.dtype for t in tensor_list])
    out_shape = list(in_shapes[0])
    out_shape[axis] = sum(s[axis] for s in in_shapes)
    out_shape = tuple(out_shape)

    if int(np.prod(out_shape, dtype=np.int64)) == 0:
        return jnp.zeros(out_shape, out_dtype)

    # Zero-extent inputs along the concat axis contribute nothing; drop them.
    tensors = [t for t in tensor_list if t.shape[axis] > 0]
    if len(tensors) == 1:
        return tensors[0].astype(out_dtype)

    itemsize = int(jnp.dtype(out_dtype).itemsize)
    in_bytes = sum(int(np.prod(t.shape, dtype=np.int64)) *
                   int(jnp.dtype(t.dtype).itemsize) for t in tensors)
    out_bytes = int(np.prod(out_shape, dtype=np.int64)) * itemsize
    if in_bytes + out_bytes < xla_fallback_bytes:
        # Tiny tensors: let XLA fuse the concat into producers/consumers.
        return jnp.concatenate(tensor_list, axis=axis)

    outer = int(np.prod(out_shape[:axis], dtype=np.int64)) if axis > 0 else 1
    inner = (int(np.prod(out_shape[axis + 1:], dtype=np.int64))
             if axis + 1 < ndim else 1)
    c_sizes = [int(t.shape[axis]) for t in tensors]
    c_total = int(out_shape[axis])
    cost = pl.CostEstimate(flops=0, transcendentals=0,
                           bytes_accessed=int(in_bytes + out_bytes))

    # ---- Leading-axis concat: one contiguous slab per input -> HBM->HBM DMA.
    if (outer == 1
            and all(t.dtype == out_dtype for t in tensors)
            and all((c * inner * itemsize) % _DMA_ALIGN_BYTES == 0
                    for c in c_sizes)):
        return _concat_dma(tensors, c_sizes, inner, out_dtype, out_shape, cost)

    if inner == 1:
        # Concat along the trailing (lane) axis.
        if c_total >= 128:
            out = _concat_lanes([t.reshape(outer, c)
                                 for t, c in zip(tensors, c_sizes)],
                                c_sizes, out_dtype, cost)
            if out is not None:
                return out.reshape(out_shape)
        # Lane width < 128 (masked stores, tiny strided HBM rows) or concat
        # extent too large for one VMEM block: let XLA handle it.
        return jnp.concatenate(tensor_list, axis=axis)

    if inner % 128 == 0:
        # Fold the concat axis into lanes: per-input stores become large
        # lane-aligned unmasked vst (offsets off_i*inner are multiples of 128).
        out = _concat_lanes([t.reshape(outer, c * inner)
                             for t, c in zip(tensors, c_sizes)],
                            [c * inner for c in c_sizes], out_dtype, cost)
        if out is not None:
            return out.reshape(out_shape)

    out = _concat_3d(tensors, c_sizes, outer, inner, out_dtype, cost)
    if out is not None:
        return out.reshape(out_shape)

    # Concat extent alone exceeds the VMEM block budget.
    # TODO(synk): split the concat extent over an extra grid axis (input groups)
    # instead of deferring to XLA for this rare case.
    return jnp.concatenate(tensor_list, axis=axis)


class Concat:
    """Mirror of the PyTorch module: callable that concatenates along `axis`."""

    def __init__(self, axis, xla_fallback_bytes=0):
        self.axis = axis
        self.xla_fallback_bytes = xla_fallback_bytes

    def __call__(self, *tensor_list):
        return concat_pallas(list(tensor_list), self.axis,
                             xla_fallback_bytes=self.xla_fallback_bytes)


if __name__ == "__main__":
    key = jax.random.PRNGKey(0)
    k1, k2, k3, k4, k5 = jax.random.split(key, 5)

    # NCHW inputs: batch=2, channels=4, spatial=16x16.
    x1 = jax.random.normal(k1, (2, 4, 16, 16), dtype=jnp.float32)
    x2 = jax.random.normal(k2, (2, 4, 16, 16), dtype=jnp.float32)
    x3 = jax.random.normal(k3, (2, 4, 16, 16), dtype=jnp.float32)

    # Channel concat (axis=1): inner = 256 (128-aligned) -> lane-flattened path.
    out_c = jax.block_until_ready(Concat(axis=1)(x1, x2, x3))
    ref_c = jnp.concatenate([x1, x2, x3], axis=1)
    assert out_c.shape == (2, 12, 16, 16), out_c.shape
    assert out_c.dtype == ref_c.dtype
    np.testing.assert_array_equal(np.asarray(out_c), np.asarray(ref_c))

    # Leading-axis concat (axis=0): outer == 1 -> direct HBM->HBM DMA path.
    out_b = jax.block_until_ready(Concat(axis=0)(x1, x2, x3))
    ref_b = jnp.concatenate([x1, x2, x3], axis=0)
    assert out_b.shape == (6, 4, 16, 16), out_b.shape
    np.testing.assert_array_equal(np.asarray(out_b), np.asarray(ref_b))

    # Trailing-axis concat with lane-dense width (seq=8, hidden=128 per input).
    y1 = jax.random.normal(k4, (2, 8, 128), dtype=jnp.float32)
    y2 = jax.random.normal(k5, (2, 8, 128), dtype=jnp.float32)
    out_l = jax.block_until_ready(Concat(axis=-1)(y1, y2))
    ref_l = jnp.concatenate([y1, y2], axis=-1)
    assert out_l.shape == (2, 8, 256), out_l.shape
    np.testing.assert_array_equal(np.asarray(out_l), np.asarray(ref_l))

    # Narrow trailing-axis concat (total lane width 48 < 128): XLA fallback path.
    out_w = jax.block_until_ready(Concat(axis=-1)(x1, x2, x3))
    ref_w = jnp.concatenate([x1, x2, x3], axis=-1)
    np.testing.assert_array_equal(np.asarray(out_w), np.asarray(ref_w))

    print("KERNEL_OK")
</pallas_src>

<mosaic_0001>
module attributes {stable_mosaic.version = 11 : i64} {
  func.func @kernel(%arg0: i32, %arg1: memref<2x1024xf32, #tpu.memory_space<vmem>>, %arg2: memref<2x1024xf32, #tpu.memory_space<vmem>>, %arg3: memref<2x1024xf32, #tpu.memory_space<vmem>>, %arg4: memref<2x3072xf32, #tpu.memory_space<vmem>>) attributes {dimension_semantics = [#tpu.dimension_semantics<parallel>], iteration_bounds = array<i64: 1>, scalar_prefetch = 0 : i64, scratch_operands = 0 : i64, tpu.core_type = #tpu.core_type<tc>, window_params = [{transform_indices = @transform_0, window_bounds = array<i64: 2, 1024>}, {transform_indices = @transform_1, window_bounds = array<i64: 2, 1024>}, {transform_indices = @transform_2, window_bounds = array<i64: 2, 1024>}, {transform_indices = @transform_3, window_bounds = array<i64: 2, 3072>}]} {
    %c0 = arith.constant 0 : index
    %c0_0 = arith.constant 0 : index
    %0 = vector.load %arg1[%c0, %c0_0] : memref<2x1024xf32, #tpu.memory_space<vmem>>, vector<2x1024xf32>
    %c0_1 = arith.constant 0 : index
    %c0_2 = arith.constant 0 : index
    %1 = vector.load %arg4[%c0_1, %c0_2] : memref<2x3072xf32, #tpu.memory_space<vmem>>, vector<2x1024xf32>
    tpu.vector_store %arg4[%c0_1, %c0_2], %0 {strides = array<i32>} : memref<2x3072xf32, #tpu.memory_space<vmem>>, vector<2x1024xf32>,
    %c0_3 = arith.constant 0 : index
    %c0_4 = arith.constant 0 : index
    %2 = vector.load %arg2[%c0_3, %c0_4] : memref<2x1024xf32, #tpu.memory_space<vmem>>, vector<2x1024xf32>
    %c0_5 = arith.constant 0 : index
    %c1024 = arith.constant 1024 : index
    %3 = vector.load %arg4[%c0_5, %c1024] : memref<2x3072xf32, #tpu.memory_space<vmem>>, vector<2x1024xf32>
    tpu.vector_store %arg4[%c0_5, %c1024], %2 {strides = array<i32>} : memref<2x3072xf32, #tpu.memory_space<vmem>>, vector<2x1024xf32>,
    %c0_6 = arith.constant 0 : index
    %c0_7 = arith.constant 0 : index
    %4 = vector.load %arg3[%c0_6, %c0_7] : memref<2x1024xf32, #tpu.memory_space<vmem>>, vector<2x1024xf32>
    %c0_8 = arith.constant 0 : index
    %c2048 = arith.constant 2048 : index
    %5 = vector.load %arg4[%c0_8, %c2048] : memref<2x3072xf32, #tpu.memory_space<vmem>>, vector<2x1024xf32>
    tpu.vector_store %arg4[%c0_8, %c2048], %4 {strides = array<i32>} : memref<2x3072xf32, #tpu.memory_space<vmem>>, vector<2x1024xf32>,
    return
  }
  func.func @transform_0(%arg0: i32) -> (i32, i32) {
    %c0_i32 = arith.constant 0 : i32
    %c0_i32_0 = arith.constant 0 : i32
    return %arg0, %c0_i32 : i32, i32
  }
  func.func @transform_1(%arg0: i32) -> (i32, i32) {
    %c0_i32 = arith.constant 0 : i32
    %c0_i32_0 = arith.constant 0 : i32
    return %arg0, %c0_i32 : i32, i32
  }
  func.func @transform_2(%arg0: i32) -> (i32, i32) {
    %c0_i32 = arith.constant 0 : i32
    %c0_i32_0 = arith.constant 0 : i32
    return %arg0, %c0_i32 : i32, i32
  }
  func.func @transform_3(%arg0: i32) -> (i32, i32) {
    %c0_i32 = arith.constant 0 : i32
    %c0_i32_0 = arith.constant 0 : i32
    return %arg0, %c0_i32 : i32, i32
  }
}

</mosaic_0001>

<llo_original>
// kernel: tpu_custom_call.1
$region0: #{tpu_custom_call.1}
  #allocation0 [shape = 'u32[]', space=smem, size = 0x4, offset = 0x4, fixed_abs, tag = 'smem constant byte address 0x4 - core index']
  #allocation1 [shape = 'u32[144,128]{1,0:T(1,128)}', space=vmem, size = 0x12000, scoped, tag = 'internal scratch']
  %s0 = inlined_call_operand.hbm [shape: f32[2,1024], index: 0, kind: input, shape index: {}]
  %s1 = inlined_call_operand.hbm [shape: f32[2,1024], index: 1, kind: input, shape index: {}]
  %s2 = inlined_call_operand.hbm [shape: f32[2,1024], index: 2, kind: input, shape index: {}]
  %s3 = inlined_call_operand.hbm [shape: f32[2,3072], index: 3, kind: output, shape index: {}]
  %s4 = sld [smem:[#allocation0]]
  $region34: #{tpu_custom_call.1} parent=0
    _
  %s6 = ssub.s32 1, %s4
  %s7 = scalar_select 0, %s6, %s4
  $region1: #{tpu_custom_call.1} parent=0
    #allocation2 [shape = 'u8[8192]{0}', space=vmem, size = 0x2000, scoped, tag = 'input window, operand 0, single buffered']
    #allocation3 [shape = 's32[1]{0}', space=sflag, size = 0x4, scoped, tag = 'scoped memory for tpu_custom_call.1']
    #allocation4 [shape = 's32[1]{0}', space=sflag, size = 0x4, scoped, tag = 'scoped memory for tpu_custom_call.1']
    #allocation5 [shape = 'u8[8192]{0}', space=vmem, size = 0x2000, scoped, tag = 'input window, operand 1, single buffered']
    #allocation6 [shape = 's32[1]{0}', space=sflag, size = 0x4, scoped, tag = 'scoped memory for tpu_custom_call.1']
    #allocation7 [shape = 'u8[8192]{0}', space=vmem, size = 0x2000, scoped, tag = 'input window, operand 2, single buffered']
    #allocation8 [shape = 'u8[24576]{0}', space=vmem, size = 0x6000, scoped, tag = 'output window, operand 0, single buffered']
    %8 = vsyncpa [#allocation3], 0
    %9 = vsyncpa [#allocation6], 0
    %10 = vsyncpa [#allocation4], 0
    // Predicated region
    $region2: #{tpu_custom_call.1} parent=1 // pred_check
      _
    $region3: #{tpu_custom_call.1} parent=1 // pred_check_branch
      %12 = sbr.rel (0) target = $region5
    $region4: #{tpu_custom_call.1} parent=1 // pred_region
      %s14 = ssub.s32 256, 256
      %15 = vsyncadd [#allocation3], %s14
      %s17 = sshll.u32 [#allocation2], 4
      %s18 = int_to_ptr.vmem [resolvable:$true] %s17
      %20 = dma.hbm_to_vmem [thread:$0]  %s0, 256, %s18, [#allocation3]
    $region5: #{tpu_custom_call.1} parent=1 // pred_fallthru
      _
    // Predicated region
    $region6: #{tpu_custom_call.1} parent=1 // pred_check
      _
    $region7: #{tpu_custom_call.1} parent=1 // pred_check_branch
      %22 = sbr.rel (0) target = $region9
    $region8: #{tpu_custom_call.1} parent=1 // pred_region
      %s24 = ssub.s32 256, 256
      %25 = vsyncadd [#allocation6], %s24
      %s27 = sshll.u32 [#allocation5], 4
      %s28 = int_to_ptr.vmem [resolvable:$true] %s27
      %30 = dma.hbm_to_vmem [thread:$0]  %s1, 256, %s28, [#allocation6]
    $region9: #{tpu_custom_call.1} parent=1 // pred_fallthru
      _
    // Predicated region
    $region10: #{tpu_custom_call.1} parent=1 // pred_check
      _
    $region11: #{tpu_custom_call.1} parent=1 // pred_check_branch
      %32 = sbr.rel (0) target = $region13
    $region12: #{tpu_custom_call.1} parent=1 // pred_region
      %s34 = ssub.s32 256, 256
      %35 = vsyncadd [#allocation6], %s34
      %s37 = sshll.u32 [#allocation7], 4
      %s38 = int_to_ptr.vmem [resolvable:$true] %s37
      %40 = dma.hbm_to_vmem [thread:$0]  %s2, 256, %s38, [#allocation6]
    $region13: #{tpu_custom_call.1} parent=1 // pred_fallthru
      _
    // Predicated region
    $region14: #{tpu_custom_call.1} parent=1 // pred_check
      _
    $region15: #{tpu_custom_call.1} parent=1 // pred_check_branch
      %42 = sbr.rel (0) target = $region17
    $region16: #{tpu_custom_call.1} parent=1 // pred_region
      %43 = dma.done [#allocation3], 256
    $region17: #{tpu_custom_call.1} parent=1 // pred_fallthru
      _
    // Predicated region
    $region18: #{tpu_custom_call.1} parent=1 // pred_check
      _
    $region19: #{tpu_custom_call.1} parent=1 // pred_check_branch
      %45 = sbr.rel (0) target = $region21
    $region20: #{tpu_custom_call.1} parent=1 // pred_region
      %46 = dma.done [#allocation6], 256
    $region21: #{tpu_custom_call.1} parent=1 // pred_fallthru
      _
    // Predicated region
    $region22: #{tpu_custom_call.1} parent=1 // pred_check
      _
    $region23: #{tpu_custom_call.1} parent=1 // pred_check_branch
      %48 = sbr.rel (0) target = $region25
    $region24: #{tpu_custom_call.1} parent=1 // pred_region
      %49 = dma.done [#allocation6], 256
    $region25: #{tpu_custom_call.1} parent=1 // pred_fallthru
      _
    %v50 = vld [vmem:[#allocation2] sm:$0xff]
    %v51 = vld [vmem:[#allocation2 + $0x8] sm:$0xff]
    %52 = vst [vmem:[#allocation8] sm:$0xff] %v50
    %53 = vst [vmem:[#allocation8 + $0x8] sm:$0xff] %v51
    %v54 = vld [vmem:[#allocation5] sm:$0xff]
    %v55 = vld [vmem:[#allocation5 + $0x8] sm:$0xff]
    %56 = vst [vmem:[#allocation8 + $0x10] sm:$0xff] %v54
    %57 = vst [vmem:[#allocation8 + $0x18] sm:$0xff] %v55
    %v58 = vld [vmem:[#allocation7] sm:$0xff]
    %v59 = vld [vmem:[#allocation7 + $0x8] sm:$0xff]
    %60 = vst [vmem:[#allocation8 + $0x20] sm:$0xff] %v58
    %61 = vst [vmem:[#allocation8 + $0x28] sm:$0xff] %v59
    // Predicated region
    $region26: #{tpu_custom_call.1} parent=1 // pred_check
      _
    $region27: #{tpu_custom_call.1} parent=1 // pred_check_branch
      %63 = sbr.rel (0) target = $region29
    $region28: #{tpu_custom_call.1} parent=1 // pred_region
      %s65 = ssub.s32 768, 768
      %66 = vsyncadd [#allocation4], %s65
      %s68 = sshll.u32 [#allocation8], 4
      %s69 = int_to_ptr.vmem [resolvable:$true] %s68
      %71 = dma.vmem_to_hbm [thread:$0]  %s69, 768, %s3, [#allocation4]
    $region29: #{tpu_custom_call.1} parent=1 // pred_fallthru
      _
    // Predicated region
    $region30: #{tpu_custom_call.1} parent=1 // pred_check
      _
    $region31: #{tpu_custom_call.1} parent=1 // pred_check_branch
      %73 = sbr.rel (0) target = $region33
    $region32: #{tpu_custom_call.1} parent=1 // pred_region
      %74 = dma.done [#allocation4], 768
    $region33: #{tpu_custom_call.1} parent=1 // pred_fallthru
      _
    %75 = vsyncpa [#allocation3], 1
    %76 = vsyncpa [#allocation6], 1
    %77 = vsyncpa [#allocation4], 1

</llo_original>
